<compile_context>
chip_gen: v7x
topology: tpu7x:2x2x1
jax: 0.10.0
libtpu: 0.0.40
codegen_flags: <defaults>
</compile_context>

<pallas_src>
import jax
import jax.numpy as jnp
from jax import lax
from jax.experimental import pallas as pl
from jax.experimental.pallas import tpu as pltpu


# ---------------------------------------------------------------------------
# Kernels
# ---------------------------------------------------------------------------
def critic_kernel(x_ref, w1_ref, b1_ref, w3r_ref, b3_ref, o_ref):
    """Batch-major layout: x (tb, in_dim) -> out (tb, 1)."""
    # fc1 on the MXU, f32 accumulation regardless of input dtype.
    h = jnp.dot(x_ref[...], w1_ref[...], preferred_element_type=jnp.float32)
    h = jnp.maximum(h + b1_ref[...], 0.0)                     # VPU, f32
    # fc3 (out_dim == 1): broadcast multiply (VPU) + lane reduction (XLU)
    # instead of a 1-column MXU matmul; bias is a scalar read from SMEM.
    out = jnp.sum(h * w3r_ref[...], axis=-1, keepdims=True) + b3_ref[0, 0]
    o_ref[...] = out.astype(o_ref.dtype)


def critic_kernel_fm(xT_ref, w1_ref, b1c_ref, w3r_ref, b3_ref, o_ref):
    """Feature-major (lane-dense) layout: xT (in_dim, tb) -> out (1, tb)."""
    # hT = w1^T @ xT  -> (hidden, tb) on the MXU, f32 accumulation.
    hT = lax.dot_general(
        w1_ref[...], xT_ref[...],
        dimension_numbers=(((0,), (0,)), ((), ())),
        preferred_element_type=jnp.float32)
    hT = jnp.maximum(hT + b1c_ref[...], 0.0)                  # VPU, f32
    # fc3 is a (1, hidden) @ (hidden, tb) MXU matmul -> lane-dense (1, tb).
    out = jnp.dot(w3r_ref[...], hT,
                  preferred_element_type=jnp.float32) + b3_ref[0, 0]
    o_ref[...] = out.astype(o_ref.dtype)


# ---------------------------------------------------------------------------
# Tiling / cost helpers
# ---------------------------------------------------------------------------
def _round_up(x, m):
    return ((x + m - 1) // m) * m


def _per_generation_tiling():
    """(batch_tile_rows, vmem_limit_bytes) sized to the device generation.

    Budget ~2.5 KB per streamed row in the padded batch-major layout
    (x lane-padded 16->128, double-buffered, + padded h + padded (tb,1) out).
    """
    kind = ""
    try:
        kind = jax.devices()[0].device_kind.lower()
    except Exception:
        pass
    if "v6" in kind:                       # 128 MiB physical VMEM, ~1.4 TB/s HBM
        return 16384, 80 * 1024 * 1024
    if "v7" in kind or "7x" in kind:       # 64 MiB physical VMEM, 2 TCs
        return 8192, 48 * 1024 * 1024
    # v5e (16 MiB default scoped VMEM) and unknown chips: conservative, but
    # still large enough to dwarf the ~600-cycle per-grid-step overhead.
    return 4096, 32 * 1024 * 1024


def _cost_estimate(batch, in_dim, hidden, x_itemsize):
    flops = 2 * batch * in_dim * hidden + 3 * batch * hidden      # fc1 + bias/relu + fc3
    bytes_accessed = (batch * in_dim * x_itemsize                 # x stream (dominant)
                      + batch * 4                                 # output
                      + (in_dim * hidden + 2 * hidden + 1) * 4)   # resident weights
    return pl.CostEstimate(flops=flops, transcendentals=0,
                           bytes_accessed=bytes_accessed)


# ---------------------------------------------------------------------------
# Batch-major wrappers (x: (B, in_dim) -> out: (B, 1))
# ---------------------------------------------------------------------------
def _critic_single_block(x, w1, b1, w3_row, b3):
    """Small batch: no grid, whole arrays as single VMEM blocks."""
    B, in_dim = x.shape
    hidden = w1.shape[1]
    return pl.pallas_call(
        critic_kernel,
        out_shape=jax.ShapeDtypeStruct((B, 1), jnp.float32),
        in_specs=[
            pl.BlockSpec(memory_space=pltpu.MemorySpace.VMEM),    # x
            pl.BlockSpec(memory_space=pltpu.MemorySpace.VMEM),    # w1
            pl.BlockSpec(memory_space=pltpu.MemorySpace.VMEM),    # b1
            pl.BlockSpec(memory_space=pltpu.MemorySpace.VMEM),    # w3 row
            pl.BlockSpec(memory_space=pltpu.MemorySpace.SMEM),    # b3 scalar
        ],
        out_specs=pl.BlockSpec(memory_space=pltpu.MemorySpace.VMEM),
        cost_estimate=_cost_estimate(B, in_dim, hidden, x.dtype.itemsize),
    )(x, w1, b1, w3_row, b3)


def _critic_batch_tiled(x, w1, b1, w3_row, b3, tb, vmem_limit):
    """Large batch: tile only the batch axis; weights stay VMEM-resident."""
    B, in_dim = x.shape
    hidden = w1.shape[1]
    # Guarantee >= 2 grid steps so both v7x TensorCores get a DMA stream.
    tb = min(tb, _round_up(pl.cdiv(B, 2), 8))
    return pl.pallas_call(
        critic_kernel,
        out_shape=jax.ShapeDtypeStruct((B, 1), jnp.float32),
        grid=(pl.cdiv(B, tb),),
        in_specs=[
            pl.BlockSpec((tb, in_dim), lambda i: (i, 0)),         # x: streamed
            pl.BlockSpec((in_dim, hidden), lambda i: (0, 0)),     # w1: resident
            pl.BlockSpec((1, hidden), lambda i: (0, 0)),          # b1: resident
            pl.BlockSpec((1, hidden), lambda i: (0, 0)),          # w3: resident
            pl.BlockSpec(memory_space=pltpu.MemorySpace.SMEM),    # b3: scalar
        ],
        out_specs=pl.BlockSpec((tb, 1), lambda i: (i, 0)),
        compiler_params=pltpu.CompilerParams(
            dimension_semantics=("parallel",),                    # megacore split
            vmem_limit_bytes=vmem_limit),
        cost_estimate=_cost_estimate(B, in_dim, hidden, x.dtype.itemsize),
    )(x, w1, b1, w3_row, b3)


def critic_forward(x, w1, b1, w3_row, b3, *, batch_tile=None,
                   single_block_max=1024):
    """x: (B, in_dim); w1: (in_dim, H); b1: (1, H); w3_row: (1, H); b3: (1, 1).
    Returns (B, 1) f32.

    To use bf16 on the fc1 MXU pass, the *producer* of x must emit bf16
    (pass bf16 x in directly).  The wrapper never casts x: a wrapper-side
    astype reads x in f32 and writes bf16 first, which is MORE HBM traffic.
    """
    B, in_dim = x.shape
    hidden = w1.shape[1]
    assert w1.shape[0] == in_dim
    assert b1.shape == (1, hidden)
    assert w3_row.shape == (1, hidden) and b3.shape == (1, 1)
    if x.dtype == jnp.bfloat16 and w1.dtype != jnp.bfloat16:
        w1 = w1.astype(jnp.bfloat16)       # tiny, VMEM-resident: cast is free
    tb_default, vmem_limit = _per_generation_tiling()
    tb = tb_default if batch_tile is None else batch_tile
    if B <= single_block_max:
        return _critic_single_block(x, w1, b1, w3_row, b3)
    return _critic_batch_tiled(x, w1, b1, w3_row, b3, tb, vmem_limit)


# ---------------------------------------------------------------------------
# Feature-major (lane-dense) wrapper (xT: (in_dim, B) -> out: (1, B)).
# Only worthwhile when the producer already holds x feature-major; a
# wrapper-side transpose would cost a full extra HBM pass.
# ---------------------------------------------------------------------------
def critic_forward_feature_major(xT, w1, b1, w3_row, b3, *, batch_tile=None,
                                 single_block_max=1024):
    in_dim, B = xT.shape
    hidden = w1.shape[1]
    assert w1.shape[0] == in_dim
    assert b1.shape == (1, hidden)
    assert w3_row.shape == (1, hidden) and b3.shape == (1, 1)
    if xT.dtype == jnp.bfloat16 and w1.dtype != jnp.bfloat16:
        w1 = w1.astype(jnp.bfloat16)
    b1_col = b1.reshape(hidden, 1)         # broadcasts against (hidden, tb)
    tb_default, vmem_limit = _per_generation_tiling()
    tb = tb_default if batch_tile is None else batch_tile
    ce = _cost_estimate(B, in_dim, hidden, xT.dtype.itemsize)

    if B <= single_block_max:
        return pl.pallas_call(
            critic_kernel_fm,
            out_shape=jax.ShapeDtypeStruct((1, B), jnp.float32),
            in_specs=[
                pl.BlockSpec(memory_space=pltpu.MemorySpace.VMEM),   # xT
                pl.BlockSpec(memory_space=pltpu.MemorySpace.VMEM),   # w1
                pl.BlockSpec(memory_space=pltpu.MemorySpace.VMEM),   # b1 col
                pl.BlockSpec(memory_space=pltpu.MemorySpace.VMEM),   # w3 row
                pl.BlockSpec(memory_space=pltpu.MemorySpace.SMEM),   # b3 scalar
            ],
            out_specs=pl.BlockSpec(memory_space=pltpu.MemorySpace.VMEM),
            cost_estimate=ce,
        )(xT, w1, b1_col, w3_row, b3)

    # Lane dim of a tiled block must be a multiple of 128; also force >= 2
    # grid steps so v7x's two TensorCores both stream.
    tb = min(tb, _round_up(pl.cdiv(B, 2), 128))
    return pl.pallas_call(
        critic_kernel_fm,
        out_shape=jax.ShapeDtypeStruct((1, B), jnp.float32),
        grid=(pl.cdiv(B, tb),),
        in_specs=[
            pl.BlockSpec((in_dim, tb), lambda i: (0, i)),         # xT: streamed, lane-dense
            pl.BlockSpec((in_dim, hidden), lambda i: (0, 0)),     # w1: resident
            pl.BlockSpec((hidden, 1), lambda i: (0, 0)),          # b1 col: resident
            pl.BlockSpec((1, hidden), lambda i: (0, 0)),          # w3 row: resident
            pl.BlockSpec(memory_space=pltpu.MemorySpace.SMEM),    # b3: scalar
        ],
        out_specs=pl.BlockSpec((1, tb), lambda i: (0, i)),        # lane-dense output
        compiler_params=pltpu.CompilerParams(
            dimension_semantics=("parallel",),
            vmem_limit_bytes=vmem_limit),
        cost_estimate=ce,
    )(xT, w1, b1_col, w3_row, b3)


# ---------------------------------------------------------------------------
# Parameter init (PyTorch-Linear-style uniform bounds)
# ---------------------------------------------------------------------------
def init_critic_params(key, in_dim, out_dim=1, hidden_dim=64):
    assert out_dim == 1, "reduce-formulation kernel assumes scalar critic output"
    k1, k2, k3, k4 = jax.random.split(key, 4)
    bound1 = 1.0 / jnp.sqrt(in_dim)
    bound3 = 1.0 / jnp.sqrt(hidden_dim)
    # fc1 weight stored transposed: (in_features, out_features)
    w1 = jax.random.uniform(k1, (in_dim, hidden_dim), jnp.float32, -bound1, bound1)
    b1 = jax.random.uniform(k2, (1, hidden_dim), jnp.float32, -bound1, bound1)
    # fc3 weight stored as a lane-dense row (1, hidden).
    w3_row = jax.random.uniform(k3, (1, hidden_dim), jnp.float32, -bound3, bound3)
    b3 = jax.random.uniform(k4, (1, 1), jnp.float32, -bound3, bound3)
    # fc2 exists in the PyTorch module but is never used in forward(); skipped.
    return w1, b1, w3_row, b3


if __name__ == "__main__":
    key = jax.random.PRNGKey(0)
    kx, kp, kx2 = jax.random.split(key, 3)

    in_dim, hidden_dim, out_dim = 16, 64, 1
    w1, b1, w3_row, b3 = init_critic_params(kp, in_dim, out_dim, hidden_dim)

    def ref_fwd(xf):
        return jnp.maximum(xf @ w1 + b1, 0.0) @ w3_row.T + b3

    # --- small batch: single-shot, no grid, SMEM scalar bias ---
    B = 8
    x = jax.random.normal(kx, (B, in_dim), dtype=jnp.float32)
    out = critic_forward(x, w1, b1, w3_row, b3)
    jax.block_until_ready(out)
    ref = ref_fwd(x)
    assert out.shape == (B, out_dim)
    assert jnp.allclose(out, ref, atol=1e-5, rtol=1e-5)

    # --- batch-tiled path (small override tile for the test so the grid has
    #     >= 2 steps and a partial block; production defaults are 4K-16K) ---
    B2 = 2000
    x2 = jax.random.normal(kx2, (B2, in_dim), dtype=jnp.float32)
    out2 = critic_forward(x2, w1, b1, w3_row, b3,
                          batch_tile=1024, single_block_max=256)
    jax.block_until_ready(out2)
    ref2 = ref_fwd(x2)
    assert out2.shape == (B2, out_dim)
    assert jnp.allclose(out2, ref2, atol=1e-5, rtol=1e-5)

    # --- bf16 x emitted by the producer (no wrapper-side cast): halves the
    #     dominant x HBM stream; accumulation stays f32 in the kernel ---
    x2_bf16 = x2.astype(jnp.bfloat16)      # stands in for an upstream bf16 producer
    out3 = critic_forward(x2_bf16, w1, b1, w3_row, b3,
                          batch_tile=1024, single_block_max=256)
    jax.block_until_ready(out3)
    assert jnp.allclose(out3, ref2, atol=3e-2, rtol=3e-2)

    # --- feature-major (lane-dense) layout: xT (in_dim, B) -> out (1, B) ---
    xT = x2.T                              # test-only transpose (producer would emit this)
    out4 = critic_forward_feature_major(xT, w1, b1, w3_row, b3,
                                        batch_tile=1024, single_block_max=256)
    jax.block_until_ready(out4)
    assert out4.shape == (1, B2)
    assert jnp.allclose(out4.T, ref2, atol=1e-5, rtol=1e-5)

    print("KERNEL_OK")
</pallas_src>

<mosaic_0001>
module attributes {stable_mosaic.version = 11 : i64} {
  func.func @critic_kernel(%arg0: memref<8x16xf32, #tpu.memory_space<vmem>>, %arg1: memref<16x64xf32, #tpu.memory_space<vmem>>, %arg2: memref<1x64xf32, #tpu.memory_space<vmem>>, %arg3: memref<1x64xf32, #tpu.memory_space<vmem>>, %arg4: memref<1x1xf32, #tpu.memory_space<smem>>, %arg5: memref<8x1xf32, #tpu.memory_space<vmem>>) attributes {dimension_semantics = [], scalar_prefetch = 0 : i64, scratch_operands = 0 : i64, tpu.core_type = #tpu.core_type<tc>} {
    %c0 = arith.constant 0 : index
    %c0_0 = arith.constant 0 : index
    %0 = vector.load %arg0[%c0, %c0_0] : memref<8x16xf32, #tpu.memory_space<vmem>>, vector<8x16xf32>
    %c0_1 = arith.constant 0 : index
    %c0_2 = arith.constant 0 : index
    %1 = vector.load %arg1[%c0_1, %c0_2] : memref<16x64xf32, #tpu.memory_space<vmem>>, vector<16x64xf32>
    %cst = arith.constant dense<0.000000e+00> : vector<8x64xf32>
    %2 = tpu.matmul %0, %1, %cst {dimension_numbers = #tpu.dot_dimension_numbers<[1], [0], [0], [1], [0, 0, 1, 1], [], []>} : vector<8x16xf32>, vector<16x64xf32>, vector<8x64xf32> -> vector<8x64xf32>
    %c0_3 = arith.constant 0 : index
    %c0_4 = arith.constant 0 : index
    %3 = vector.load %arg2[%c0_3, %c0_4] : memref<1x64xf32, #tpu.memory_space<vmem>>, vector<1x64xf32>
    %4 = vector.broadcast %3 : vector<1x64xf32> to vector<8x64xf32>
    %5 = arith.addf %2, %4 : vector<8x64xf32>
    %cst_5 = arith.constant 0.000000e+00 : f32
    %6 = vector.broadcast %cst_5 : f32 to vector<8x64xf32>
    %7 = arith.maximumf %5, %6 : vector<8x64xf32>
    %c0_6 = arith.constant 0 : index
    %c0_7 = arith.constant 0 : index
    %8 = vector.load %arg3[%c0_6, %c0_7] : memref<1x64xf32, #tpu.memory_space<vmem>>, vector<1x64xf32>
    %9 = vector.broadcast %8 : vector<1x64xf32> to vector<8x64xf32>
    %10 = arith.mulf %7, %9 : vector<8x64xf32>
    %cst_8 = arith.constant dense<0.000000e+00> : vector<8xf32>
    %11 = vector.multi_reduction <add>, %10, %cst_8 [1] : vector<8x64xf32> to vector<8xf32>
    %12 = vector.shape_cast %11 : vector<8xf32> to vector<8x1xf32>
    %c0_9 = arith.constant 0 : index
    %c0_10 = arith.constant 0 : index
    %13 = memref.load %arg4[%c0_9, %c0_10] : memref<1x1xf32, #tpu.memory_space<smem>>
    %14 = vector.broadcast %13 : f32 to vector<8x1xf32>
    %15 = arith.addf %12, %14 : vector<8x1xf32>
    %c0_11 = arith.constant 0 : index
    %c0_12 = arith.constant 0 : index
    %16 = vector.load %arg5[%c0_11, %c0_12] : memref<8x1xf32, #tpu.memory_space<vmem>>, vector<8x1xf32>
    tpu.vector_store %arg5[%c0_11, %c0_12], %15 {strides = array<i32>} : memref<8x1xf32, #tpu.memory_space<vmem>>, vector<8x1xf32>,
    return
  }
}

</mosaic_0001>

<llo_original>
// kernel: tpu_custom_call.1
$region0: #{tpu_custom_call.1}
  #allocation0 [shape = 'u32[]', space=smem, size = 0x4, offset = 0x4, fixed_abs, tag = 'smem constant byte address 0x4 - core index']
  #allocation1 [shape = 'u32[144,128]{1,0:T(1,128)}', space=vmem, size = 0x12000, scoped, tag = 'internal scratch']
  #allocation2 [shape = 'f32[1,1]{1,0:T(1,128)S(6)}', space=smem, size = 0x200, scoped, tag = 'scoped memory for tpu_custom_call.1']
  %s0 = inlined_call_operand.hbm [shape: f32[8,16], index: 0, kind: input, shape index: {}]
  %s1 = inlined_call_operand.hbm [shape: f32[16,64], index: 1, kind: input, shape index: {}]
  %s2 = inlined_call_operand.vmem [shape: f32[1,64], index: 2, kind: input, shape index: {}]
  %s3 = inlined_call_operand.vmem [shape: f32[1,64], index: 3, kind: input, shape index: {}]
  %s4 = inlined_call_operand.<no memory space> [shape: f32[1,1], index: 4, kind: input, shape index: {}]
  %s5 = inlined_call_operand.vmem [shape: f32[8,1], index: 5, kind: output, shape index: {}]
  %s6 = sld [smem:[#allocation0]]
  $region38: #{tpu_custom_call.1} parent=0
    _
  %s8 = ssub.s32 1, %s6
  %s9 = scalar_select 0, %s8, %s6
  %10 = sst [smem:[#allocation2]] %s4
  $region1: #{tpu_custom_call.1} parent=0
    #allocation3 [shape = 'u8[4096]{0}', space=vmem, size = 0x1000, scoped, tag = 'input window, operand 0, single buffered']
    #allocation4 [shape = 's32[1]{0}', space=sflag, size = 0x4, scoped, tag = 'scoped memory for tpu_custom_call.1']
    #allocation5 [shape = 'u8[8192]{0}', space=vmem, size = 0x2000, scoped, tag = 'input window, operand 1, single buffered']
    #allocation6 [shape = 's32[1]{0}', space=sflag, size = 0x4, scoped, tag = 'scoped memory for tpu_custom_call.1']
    %11 = vsyncpa [#allocation4], 0
    %12 = vsyncpa [#allocation6], 0
    // Predicated region
    $region2: #{tpu_custom_call.1} parent=1 // pred_check
      _
    $region3: #{tpu_custom_call.1} parent=1 // pred_check_branch
      %14 = sbr.rel (0) target = $region5
    $region4: #{tpu_custom_call.1} parent=1 // pred_region
      %s16 = ssub.s32 128, 128
      %17 = vsyncadd [#allocation4], %s16
      %s19 = sshll.u32 [#allocation3], 4
      %s20 = int_to_ptr.vmem [resolvable:$true] %s19
      %22 = dma.hbm_to_vmem [thread:$0]  %s0, 128, %s20, [#allocation4]
    $region5: #{tpu_custom_call.1} parent=1 // pred_fallthru
      _
    // Predicated region
    $region6: #{tpu_custom_call.1} parent=1 // pred_check
      _
    $region7: #{tpu_custom_call.1} parent=1 // pred_check_branch
      %24 = sbr.rel (0) target = $region9
    $region8: #{tpu_custom_call.1} parent=1 // pred_region
      %s26 = ssub.s32 256, 256
      %27 = vsyncadd [#allocation6], %s26
      %s28 = sshll.u32 [#allocation5], 4
      %s29 = int_to_ptr.vmem [resolvable:$true] %s28
      %34 = dma.hbm_to_vmem [thread:$0]  %s1, 256, %s29, [#allocation6], 128, 128, 8
    $region9: #{tpu_custom_call.1} parent=1 // pred_fallthru
      _
    // Predicated region
    $region10: #{tpu_custom_call.1} parent=1 // pred_check
      _
    $region11: #{tpu_custom_call.1} parent=1 // pred_check_branch
      %36 = sbr.rel (0) target = $region13
    $region12: #{tpu_custom_call.1} parent=1 // pred_region
      _
    $region13: #{tpu_custom_call.1} parent=1 // pred_fallthru
      _
    // Predicated region
    $region14: #{tpu_custom_call.1} parent=1 // pred_check
      _
    $region15: #{tpu_custom_call.1} parent=1 // pred_check_branch
      %38 = sbr.rel (0) target = $region17
    $region16: #{tpu_custom_call.1} parent=1 // pred_region
      _
    $region17: #{tpu_custom_call.1} parent=1 // pred_fallthru
      _
    // Predicated region
    $region18: #{tpu_custom_call.1} parent=1 // pred_check
      _
    $region19: #{tpu_custom_call.1} parent=1 // pred_check_branch
      %40 = sbr.rel (0) target = $region21
    $region20: #{tpu_custom_call.1} parent=1 // pred_region
      _
    $region21: #{tpu_custom_call.1} parent=1 // pred_fallthru
      _
    // Predicated region
    $region22: #{tpu_custom_call.1} parent=1 // pred_check
      _
    $region23: #{tpu_custom_call.1} parent=1 // pred_check_branch
      %42 = sbr.rel (0) target = $region25
    $region24: #{tpu_custom_call.1} parent=1 // pred_region
      %43 = dma.done [#allocation4], 128
    $region25: #{tpu_custom_call.1} parent=1 // pred_fallthru
      _
    // Predicated region
    $region26: #{tpu_custom_call.1} parent=1 // pred_check
      _
    $region27: #{tpu_custom_call.1} parent=1 // pred_check_branch
      %45 = sbr.rel (0) target = $region29
    $region28: #{tpu_custom_call.1} parent=1 // pred_region
      %46 = dma.done [#allocation6], 256
    $region29: #{tpu_custom_call.1} parent=1 // pred_fallthru
      _
    %v47 = vld [vmem:[#allocation3] sm:$0xff]
    %v48 = vld [vmem:[#allocation5] sm:$0xff]
    %v49 = vld [vmem:[#allocation5 + $0x8] sm:$0xff]
    %v50 = vld [vmem:[%s2] sm:$0x1]
    %v52 = vlaneseq
    %v53 = vshrl.u32 %v52, 7
    %v54 = vsub.s32 0, %v53
    %v55 = vrot.slane %v50, %v54
    %vm57 = vcmask 130048
    %v59 = vsel %vm57, %v47, 0
    %61 = vmatprep.subr.mxu0 0.0
    %62 = vmatpush1.msra.mxu0 %v48
    %63 = vmatprep.subr.mxu0 0.0
    %64 = vmatpush1.msra.mxu0 %v49
    %65 = vmatprep.subr.mxu0 0.0
    %66 = vmatpush1.msra.mxu0 0.0
    %67 = vmatprep.subr.mxu0 0.0
    %68 = vmatpush1.msra.mxu0 0.0
    %69 = vmatprep.subr.mxu0 0.0
    %70 = vmatpush1.msra.mxu0 0.0
    %71 = vmatprep.subr.mxu0 0.0
    %72 = vmatpush1.msra.mxu0 0.0
    %73 = vmatprep.subr.mxu0 0.0
    %74 = vmatpush1.msra.mxu0 0.0
    %75 = vmatprep.subr.mxu0 0.0
    %76 = vmatpush1.msra.mxu0 0.0
    %77 = vmatprep.subr.mxu0 0.0
    %78 = vmatpush1.msra.mxu0 0.0
    %79 = vmatprep.subr.mxu0 0.0
    %80 = vmatpush1.msra.mxu0 0.0
    %81 = vmatprep.subr.mxu0 0.0
    %82 = vmatpush1.msra.mxu0 0.0
    %83 = vmatprep.subr.mxu0 0.0
    %84 = vmatpush1.msra.mxu0 0.0
    %85 = vmatprep.subr.mxu0 0.0
    %86 = vmatpush1.msra.mxu0 0.0
    %87 = vmatprep.subr.mxu0 0.0
    %88 = vmatpush1.msra.mxu0 0.0
    %89 = vmatprep.subr.mxu0 0.0
    %90 = vmatpush1.msra.mxu0 0.0
    %91 = vmatprep.subr.mxu0 0.0
    %92 = vmatpush1.msra.mxu0 0.0
    %93 = vmatprep.subr.mxu0 0.0
    %94 = vmatpush1.msra.mxu0 0.0
    %95 = vmatprep.subr.mxu0 0.0
    %96 = vmatpush1.msra.mxu0 0.0
    %97 = vmatprep.subr.mxu0 0.0
    %98 = vmatpush1.msra.mxu0 0.0
    %99 = vmatprep.subr.mxu0 0.0
    %100 = vmatpush1.msra.mxu0 0.0
    %101 = vmatprep.subr.mxu0 0.0
    %102 = vmatpush1.msra.mxu0 0.0
    %103 = vmatprep.subr.mxu0 0.0
    %104 = vmatpush1.msra.mxu0 0.0
    %105 = vmatprep.subr.mxu0 0.0
    %106 = vmatpush1.msra.mxu0 0.0
    %107 = vmatprep.subr.mxu0 0.0
    %108 = vmatpush1.msra.mxu0 0.0
    %109 = vmatprep.subr.mxu0 0.0
    %110 = vmatpush1.msra.mxu0 0.0
    %111 = vmatprep.subr.mxu0 0.0
    %112 = vmatpush1.msra.mxu0 0.0
    %113 = vmatprep.subr.mxu0 0.0
    %114 = vmatpush1.msra.mxu0 0.0
    %115 = vmatprep.subr.mxu0 0.0
    %116 = vmatpush1.msra.mxu0 0.0
    %117 = vmatprep.subr.mxu0 0.0
    %118 = vmatpush1.msra.mxu0 0.0
    %119 = vmatprep.subr.mxu0 0.0
    %120 = vmatpush1.msra.mxu0 0.0
    %121 = vmatprep.subr.mxu0 0.0
    %122 = vmatpush1.msra.mxu0 0.0
    %123 = vmatprep.subr.mxu0 0.0
    %124 = vmatpush1.msra.mxu0 0.0
    %125 = vmatprep.mubr.f32.mxu0 0.0
    %126 = vmatmul.mubr.f32.gmra.mrb[0].mxu0 %v59
    %v127 = vpop.f32.mrb[0].mxu0
    %v128 = vadd.f32 %v55, %v127
    %v129 = vpop.f32.mrb[0].mxu0
    %130 = vdwg.mxu0
    %v131 = vmax.f32 %v128, 0.0
    %v132 = vld [vmem:[%s3] sm:$0x1]
    %v134 = vlaneseq
    %v135 = vshrl.u32 %v134, 7
    %v136 = vsub.s32 0, %v135
    %v137 = vrot.slane %v132, %v136
    %v139 = vmul.f32 %v131, %v137
    %vm140 = vcmask 523264
    %v141 = vsel %vm140, %v139, 0.0
    %142 = vadd.xlane.f32.xlu0 %v141
    %v143 = vpop.xlane.xlu0 %142
    %s144 = sld [smem:[#allocation2]]
    %v145 = vstv %s144
    %v146 = vadd.f32 %v143, %v145
    %vm147 = vcmask 7168
    %148 = vst.msk [vmem:[%s5] sm:$0xff] %vm147, %v146
    // Predicated region
    $region30: #{tpu_custom_call.1} parent=1 // pred_check
      _
    $region31: #{tpu_custom_call.1} parent=1 // pred_check_branch
      %150 = sbr.rel (0) target = $region33
    $region32: #{tpu_custom_call.1} parent=1 // pred_region
      _
    $region33: #{tpu_custom_call.1} parent=1 // pred_fallthru
      _
    // Predicated region
    $region34: #{tpu_custom_call.1} parent=1 // pred_check
      _
    $region35: #{tpu_custom_call.1} parent=1 // pred_check_branch
      %152 = sbr.rel (0) target = $region37
    $region36: #{tpu_custom_call.1} parent=1 // pred_region
      _
    $region37: #{tpu_custom_call.1} parent=1 // pred_fallthru
      _
    %153 = vsyncpa [#allocation4], 1
    %154 = vsyncpa [#allocation6], 1

</llo_original>
